<compile_context>
chip_gen: v6e
topology: v6e:2x2x1
jax: 0.10.0
libtpu: 0.0.40
codegen_flags: <defaults>
</compile_context>

<pallas_src>
import functools

import jax
import jax.numpy as jnp
from jax.experimental import pallas as pl
from jax.experimental.pallas import tpu as pltpu


def _make_avg_separation_kernel(total_b: int, tile_b: int):
    """Builds the tiled reduction kernel (closes over static batch / tile sizes)."""

    def kernel(act_ref, proto_ref, out_ref, acc_ref):
        # act_ref:   (TB, 1)  native dtype in VMEM
        # proto_ref: (TB, P)  native dtype in VMEM
        # out_ref:   (1, 1)   f32 in VMEM
        # acc_ref:   (1, 1)   f32 VMEM scratch accumulator (persists across grid steps)
        pid = pl.program_id(0)

        @pl.when(pid == 0)
        def _init():
            acc_ref[...] = jnp.zeros_like(acc_ref)

        # Upcast inside the kernel; accumulate in f32.
        protos = proto_ref[...].astype(jnp.float32)                 # (TB, P)
        act = act_ref[...].astype(jnp.float32)                      # (TB, 1)
        row_sum = jnp.sum(protos, axis=1, keepdims=True)            # (TB, 1)

        # Mask rows beyond the true batch size (last block may be padded with
        # unspecified data; 0/0 there would poison the accumulator).
        row_idx = pid * tile_b + jax.lax.broadcasted_iota(jnp.int32, (tile_b, 1), 0)
        valid = row_idx < total_b
        safe_row_sum = jnp.where(valid, row_sum, jnp.float32(1.0))

        # Exact reciprocal (EUP) * activation == act / row_sum.
        per_sample = jnp.where(
            valid, act * pl.reciprocal(safe_row_sum, approx=False), jnp.float32(0.0)
        )

        acc_ref[...] += jnp.sum(per_sample).reshape(1, 1)

        @pl.when(pid == pl.num_programs(0) - 1)
        def _finalize():
            out_ref[...] = acc_ref[...] * jnp.float32(1.0 / total_b)

    return kernel


def _pick_tile_b(B: int, P: int, itemsize: int, max_tile_b: int = 512) -> int:
    """Tile rows so double-buffered proto tiles stay well inside VMEM on v5e/v6e/v7x."""
    # Conservative per-input pipeline budget (2 buffers per input); fits v7x's 64 MiB
    # physical / 32 MiB scoped-default VMEM with plenty of headroom.
    budget_bytes = 16 * 1024 * 1024
    max_rows = max(8, budget_bytes // max(1, 2 * P * itemsize))
    tb = min(max_tile_b, max_rows)
    tb = max(8, (tb // 8) * 8)          # sublane alignment (multiple of 8)
    if B <= tb:
        tb = B                          # full-extent block is always legal
    return tb


@functools.partial(jax.jit, static_argnames=())
def _avg_separation_pallas(act_2d, protos):
    B, P = protos.shape
    itemsize = jnp.dtype(protos.dtype).itemsize
    tb = _pick_tile_b(B, P, itemsize)
    num_blocks = pl.cdiv(B, tb)

    out = pl.pallas_call(
        _make_avg_separation_kernel(B, tb),
        out_shape=jax.ShapeDtypeStruct((1, 1), jnp.float32),
        grid_spec=pltpu.PrefetchScalarGridSpec(
            num_scalar_prefetch=0,
            grid=(num_blocks,),
            in_specs=[
                pl.BlockSpec((tb, 1), lambda i: (i, 0)),   # activations (native dtype)
                pl.BlockSpec((tb, P), lambda i: (i, 0)),   # wrong-class prototypes (native dtype)
            ],
            out_specs=pl.BlockSpec((1, 1), lambda i: (0, 0)),
            scratch_shapes=[pltpu.VMEM((1, 1), jnp.float32)],
        ),
        compiler_params=pltpu.CompilerParams(
            dimension_semantics=("arbitrary",),            # reduction axis (accumulator)
            vmem_limit_bytes=32 * 1024 * 1024,
        ),
    )(act_2d, protos)
    return out[0, 0]


def average_separation_cost(incorrect_class_prototype_activations, prototypes_of_wrong_class):
    """Pallas implementation of AverageSeparationCost.forward.

    Args:
      incorrect_class_prototype_activations: [B] array (any float dtype).
      prototypes_of_wrong_class: [B, P] array (must be >= 2-D, mirroring the torch assert).
    Returns:
      f32 scalar (0-d array), or None if either input is None.
    """
    if incorrect_class_prototype_activations is None or prototypes_of_wrong_class is None:
        return None
    assert prototypes_of_wrong_class.ndim > 1, "Prototypes of wrong class is 1D."

    # Keep native dtypes through the DMA; upcast happens inside the kernel.
    act = incorrect_class_prototype_activations.reshape(-1, 1)     # (B, 1)
    protos = prototypes_of_wrong_class                              # (B, P)
    assert act.shape[0] == protos.shape[0]
    return _avg_separation_pallas(act, protos)


def _reference(act, protos):
    return jnp.mean(act.astype(jnp.float32) / jnp.sum(protos.astype(jnp.float32), axis=1))


if __name__ == "__main__":
    key = jax.random.PRNGKey(0)

    # --- Case 1: small shape (single block, block == full array) ---------------
    k1, k2, k3, k4 = jax.random.split(key, 4)
    B, P = 8, 32
    act_small = jax.random.uniform(k1, (B,), dtype=jnp.float32, minval=0.1, maxval=1.0)
    protos_small = (jax.random.uniform(k2, (B, P), dtype=jnp.float32) > 0.5).astype(jnp.float32)
    protos_small = protos_small.at[:, 0].set(1.0)   # guarantee non-zero row sums

    result_small = jax.block_until_ready(average_separation_cost(act_small, protos_small))
    ref_small = _reference(act_small, protos_small)
    assert jnp.allclose(result_small, ref_small, rtol=1e-6, atol=1e-6), (result_small, ref_small)

    # --- Case 2: multi-block grid with a masked (ragged) tail -------------------
    B2, P2 = 520, 160   # 520 > 512 tile -> 2 grid steps, last block mostly padded
    act_big = jax.random.uniform(k3, (B2,), dtype=jnp.float32, minval=0.1, maxval=1.0)
    protos_big = (jax.random.uniform(k4, (B2, P2), dtype=jnp.float32) > 0.5).astype(jnp.float32)
    protos_big = protos_big.at[:, 0].set(1.0)

    result_big = jax.block_until_ready(average_separation_cost(act_big, protos_big))
    ref_big = _reference(act_big, protos_big)
    assert jnp.allclose(result_big, ref_big, rtol=1e-5, atol=1e-6), (result_big, ref_big)

    # --- Case 3: native bf16 inputs (no wrapper upcast; kernel accumulates f32) --
    result_bf16 = jax.block_until_ready(
        average_separation_cost(act_big.astype(jnp.bfloat16), protos_big.astype(jnp.bfloat16))
    )
    ref_bf16 = _reference(act_big.astype(jnp.bfloat16), protos_big.astype(jnp.bfloat16))
    assert jnp.allclose(result_bf16, ref_bf16, rtol=2e-2, atol=1e-3), (result_bf16, ref_bf16)

    print("KERNEL_OK")
</pallas_src>

<mosaic_0001>
module attributes {stable_mosaic.version = 11 : i64} {
  func.func @kernel(%arg0: i32, %arg1: memref<8x1xf32, #tpu.memory_space<vmem>>, %arg2: memref<8x32xf32, #tpu.memory_space<vmem>>, %arg3: memref<1x1xf32, #tpu.memory_space<vmem>>, %arg4: memref<1x1xf32, #tpu.memory_space<vmem>>) attributes {dimension_semantics = [#tpu.dimension_semantics<arbitrary>], iteration_bounds = array<i64: 1>, scalar_prefetch = 0 : i64, scratch_operands = 1 : i64, tpu.core_type = #tpu.core_type<tc>, window_params = [{transform_indices = @transform_0, window_bounds = array<i64: 8, 1>}, {transform_indices = @transform_1, window_bounds = array<i64: 8, 32>}, {pipeline_mode = #tpu.pipeline_mode<synchronous>, transform_indices = @transform_2, window_bounds = array<i64: 1, 1>}]} {
    %c0_i32 = arith.constant 0 : i32
    %0 = arith.cmpi eq, %arg0, %c0_i32 : i32
    %1 = arith.extui %0 : i1 to i32
    %c0_i32_0 = arith.constant 0 : i32
    %2 = arith.cmpi ne, %1, %c0_i32_0 : i32
    scf.if %2 {
      %cst_14 = arith.constant 0.000000e+00 : f32
      %30 = vector.broadcast %cst_14 : f32 to vector<1x1xf32>
      %c0_15 = arith.constant 0 : index
      %c0_16 = arith.constant 0 : index
      %31 = vector.load %arg4[%c0_15, %c0_16] : memref<1x1xf32, #tpu.memory_space<vmem>>, vector<1x1xf32>
      tpu.vector_store %arg4[%c0_15, %c0_16], %30 {strides = array<i32>} : memref<1x1xf32, #tpu.memory_space<vmem>>, vector<1x1xf32>,
    } else {
    }
    %c0 = arith.constant 0 : index
    %c0_1 = arith.constant 0 : index
    %3 = vector.load %arg2[%c0, %c0_1] : memref<8x32xf32, #tpu.memory_space<vmem>>, vector<8x32xf32>
    %c0_2 = arith.constant 0 : index
    %c0_3 = arith.constant 0 : index
    %4 = vector.load %arg1[%c0_2, %c0_3] : memref<8x1xf32, #tpu.memory_space<vmem>>, vector<8x1xf32>
    %cst = arith.constant dense<0.000000e+00> : vector<8xf32>
    %5 = vector.multi_reduction <add>, %3, %cst [1] : vector<8x32xf32> to vector<8xf32>
    %6 = vector.shape_cast %5 : vector<8xf32> to vector<8x1xf32>
    %c8_i32 = arith.constant 8 : i32
    %7 = arith.muli %arg0, %c8_i32 : i32
    %8 = tpu.iota {dimensions = array<i32: 0>} : vector<8x1xi32>
    %9 = vector.broadcast %7 : i32 to vector<8x1xi32>
    %10 = arith.addi %9, %8 : vector<8x1xi32>
    %c8_i32_4 = arith.constant 8 : i32
    %11 = vector.broadcast %c8_i32_4 : i32 to vector<8x1xi32>
    %12 = arith.cmpi slt, %10, %11 : vector<8x1xi32>
    %cst_5 = arith.constant 1.000000e+00 : f32
    %13 = vector.broadcast %cst_5 : f32 to vector<8x1xf32>
    %14 = arith.select %12, %6, %13 : vector<8x1xi1>, vector<8x1xf32>
    %15 = tpu.reciprocal %14 : vector<8x1xf32> -> vector<8x1xf32>
    %16 = arith.mulf %4, %15 : vector<8x1xf32>
    %cst_6 = arith.constant 0.000000e+00 : f32
    %17 = vector.broadcast %cst_6 : f32 to vector<8x1xf32>
    %18 = arith.select %12, %16, %17 : vector<8x1xi1>, vector<8x1xf32>
    %c0_7 = arith.constant 0 : index
    %c0_8 = arith.constant 0 : index
    %19 = vector.load %arg4[%c0_7, %c0_8] : memref<1x1xf32, #tpu.memory_space<vmem>>, vector<1x1xf32>
    %20 = vector.shape_cast %18 : vector<8x1xf32> to vector<1x8x1xf32>
    %cst_9 = arith.constant dense<0.000000e+00> : vector<1xf32>
    %21 = vector.multi_reduction <add>, %20, %cst_9 [1, 2] : vector<1x8x1xf32> to vector<1xf32>
    %22 = vector.shape_cast %21 : vector<1xf32> to vector<1x1x1xf32>
    %23 = vector.extract %22[0, 0, 0] : f32 from vector<1x1x1xf32>
    %24 = vector.broadcast %23 : f32 to vector<1x1xf32>
    %25 = arith.addf %19, %24 : vector<1x1xf32>
    %c0_10 = arith.constant 0 : index
    %c0_11 = arith.constant 0 : index
    %26 = vector.load %arg4[%c0_10, %c0_11] : memref<1x1xf32, #tpu.memory_space<vmem>>, vector<1x1xf32>
    tpu.vector_store %arg4[%c0_10, %c0_11], %25 {strides = array<i32>} : memref<1x1xf32, #tpu.memory_space<vmem>>, vector<1x1xf32>,
    %c0_i32_12 = arith.constant 0 : i32
    %27 = arith.cmpi eq, %arg0, %c0_i32_12 : i32
    %28 = arith.extui %27 : i1 to i32
    %c0_i32_13 = arith.constant 0 : i32
    %29 = arith.cmpi ne, %28, %c0_i32_13 : i32
    scf.if %29 {
      %c0_14 = arith.constant 0 : index
      %c0_15 = arith.constant 0 : index
      %30 = vector.load %arg4[%c0_14, %c0_15] : memref<1x1xf32, #tpu.memory_space<vmem>>, vector<1x1xf32>
      %cst_16 = arith.constant 1.250000e-01 : f32
      %31 = vector.broadcast %cst_16 : f32 to vector<1x1xf32>
      %32 = arith.mulf %30, %31 : vector<1x1xf32>
      %c0_17 = arith.constant 0 : index
      %c0_18 = arith.constant 0 : index
      %33 = vector.load %arg3[%c0_17, %c0_18] : memref<1x1xf32, #tpu.memory_space<vmem>>, vector<1x1xf32>
      tpu.vector_store %arg3[%c0_17, %c0_18], %32 {strides = array<i32>} : memref<1x1xf32, #tpu.memory_space<vmem>>, vector<1x1xf32>,
    } else {
    }
    return
  }
  func.func @transform_0(%arg0: i32) -> (i32, i32) {
    %c0_i32 = arith.constant 0 : i32
    %c0_i32_0 = arith.constant 0 : i32
    return %arg0, %c0_i32 : i32, i32
  }
  func.func @transform_1(%arg0: i32) -> (i32, i32) {
    %c0_i32 = arith.constant 0 : i32
    %c0_i32_0 = arith.constant 0 : i32
    return %arg0, %c0_i32 : i32, i32
  }
  func.func @transform_2(%arg0: i32) -> (i32, i32) {
    %c0_i32 = arith.constant 0 : i32
    %c0_i32_0 = arith.constant 0 : i32
    %c0_i32_1 = arith.constant 0 : i32
    return %c0_i32, %c0_i32_0 : i32, i32
  }
}

</mosaic_0001>

<llo_original>
// kernel: _avg_separation_pallas.1
$region0: #{_avg_separation_pallas.1}
  #allocation0 [shape = 'u32[]', space=smem, size = 0x4, offset = 0x4, fixed_abs, tag = 'smem constant byte address 0x4 - core index']
  #allocation1 [shape = 'u32[144,128]{1,0:T(1,128)}', space=vmem, size = 0x12000, scoped, tag = 'internal scratch']
  #allocation2 [shape = 'f32[1,1]{1,0:T(1,128)}', space=vmem, size = 0x200, scoped, tag = 'scratch operand']
  %s0 = inlined_call_operand.vmem [shape: f32[8,1], index: 0, kind: input, shape index: {}]
  %s1 = inlined_call_operand.vmem [shape: f32[8,32], index: 1, kind: input, shape index: {}]
  %s2 = inlined_call_operand.hbm [shape: f32[1,1], index: 2, kind: output, shape index: {}]
  %s3 = sld [smem:[#allocation0]]
  $region26: #{_avg_separation_pallas.1} parent=0
    _
  %s5 = ssub.s32 1, %s3
  %s6 = scalar_select 0, %s5, %s3
  $region1: #{_avg_separation_pallas.1} parent=0
    #allocation3 [shape = 'u8[512]{0}', space=vmem, size = 0x400, scoped, tag = 'output window, operand 0, single buffered']
    #allocation4 [shape = 's32[1]{0}', space=sflag, size = 0x4, scoped, tag = 'scoped memory for _avg_separation_pallas.1']
    %7 = vsyncpa [#allocation4], 0
    // Predicated region
    $region2: #{_avg_separation_pallas.1} parent=1 // pred_check
      _
    $region3: #{_avg_separation_pallas.1} parent=1 // pred_check_branch
      %9 = sbr.rel (0) target = $region5
    $region4: #{_avg_separation_pallas.1} parent=1 // pred_region
      _
    $region5: #{_avg_separation_pallas.1} parent=1 // pred_fallthru
      _
    // Predicated region
    $region6: #{_avg_separation_pallas.1} parent=1 // pred_check
      _
    $region7: #{_avg_separation_pallas.1} parent=1 // pred_check_branch
      %11 = sbr.rel (0) target = $region9
    $region8: #{_avg_separation_pallas.1} parent=1 // pred_region
      _
    $region9: #{_avg_separation_pallas.1} parent=1 // pred_fallthru
      _
    %p12 = scmp.eq.s32.totalorder 0, 0
    // Predicated region
    $region10: #{_avg_separation_pallas.1} parent=1 // pred_check
      %p13 = pneg %p12
    $region11: #{_avg_separation_pallas.1} parent=1 // pred_check_branch
      %15 = sbr.rel (%p13) target = $region13
    $region12: #{_avg_separation_pallas.1} parent=1 // pred_region
      %vm16 = vcmask 0
      %17 = vst.msk [vmem:[#allocation2] sm:$0x1] %vm16, 0.0
    $region13: #{_avg_separation_pallas.1} parent=1 // pred_fallthru
      _
    %v18 = vld [vmem:[%s1] sm:$0xff]
    %v19 = vld [vmem:[%s0] sm:$0xff]
    %vm20 = vcmask 261120
    %v21 = vsel %vm20, %v18, 0.0
    %22 = vadd.xlane.f32.xlu0 %v21
    %v23 = vpop.xlane.xlu0 %22
    %s24 = smul.u32 0, 8
    %v25 = vlaneseq
    %v26 = vshrl.u32 %v25, 7
    %v27 = vstv %s24
    %v28 = vadd.s32 %v27, %v26
    %vm29 = vcmp.lt.s32.totalorder %v28, 8
    %v30 = vsel %vm29, %v23, 1.0
    %v31 = vrcp.pop %v30
    %v32 = vmul.f32 %v19, %v31
    %v33 = vsel %vm29, %v32, 0.0
    %v34 = vld [vmem:[#allocation2] sm:$0x1]
    %vm35 = vcmask 7168
    %v36 = vsel %vm35, %v33, 0.0
    %37 = vadd.xlane.f32.xlu0 %v36
    %v38 = vpop.xlane.xlu0 %37
    %v39 = vrot.slane %v38, 4
    %v40 = vadd.f32 %v38, %v39
    %v41 = vrot.slane %v40, 2
    %v42 = vadd.f32 %v40, %v41
    %v43 = vrot.slane %v42, 1
    %v44 = vadd.f32 %v42, %v43
    %s45 = vtos %v44
    %v46 = vstv %s45
    %v47 = vadd.f32 %v34, %v46
    %vm48 = vcmask 0
    %49 = vst.msk [vmem:[#allocation2] sm:$0x1] %vm48, %v47
    // Predicated region
    $region14: #{_avg_separation_pallas.1} parent=1 // pred_check
      %p50 = pneg %p12
    $region15: #{_avg_separation_pallas.1} parent=1 // pred_check_branch
      %52 = sbr.rel (%p50) target = $region17
    $region16: #{_avg_separation_pallas.1} parent=1 // pred_region
      %v53 = vld [vmem:[#allocation2] sm:$0x1]
      %v54 = vmul.f32 %v53, 0.125
      %55 = vst.msk [vmem:[#allocation3] sm:$0x1] %vm48, %v54
    $region17: #{_avg_separation_pallas.1} parent=1 // pred_fallthru
      _
    // Predicated region
    $region18: #{_avg_separation_pallas.1} parent=1 // pred_check
      _
    $region19: #{_avg_separation_pallas.1} parent=1 // pred_check_branch
      %57 = sbr.rel (0) target = $region21
    $region20: #{_avg_separation_pallas.1} parent=1 // pred_region
      %s59 = ssub.s32 16, 16
      %60 = vsyncadd [#allocation4], %s59
      %s62 = sshll.u32 [#allocation3], 4
      %s63 = int_to_ptr.vmem [resolvable:$true] %s62
      %65 = dma.vmem_to_hbm [thread:$0]  %s63, 16, %s2, [#allocation4]
    $region21: #{_avg_separation_pallas.1} parent=1 // pred_fallthru
      _
    // Predicated region
    $region22: #{_avg_separation_pallas.1} parent=1 // pred_check
      _
    $region23: #{_avg_separation_pallas.1} parent=1 // pred_check_branch
      %67 = sbr.rel (0) target = $region25
    $region24: #{_avg_separation_pallas.1} parent=1 // pred_region
      %68 = dma.done [#allocation4], 16
    $region25: #{_avg_separation_pallas.1} parent=1 // pred_fallthru
      _
    %69 = vsyncpa [#allocation4], 1

</llo_original>
